<compile_context>
chip_gen: v5e
topology: v5e:2x2
jax: 0.10.0
libtpu: 0.0.40
codegen_flags: <defaults>
</compile_context>

<pallas_src>
import functools

import jax
import jax.numpy as jnp
from jax.experimental import pallas as pl
from jax.experimental.pallas import tpu as pltpu

LN_EPS = 1e-5


def _pff_kernel(xpad_ref, w1_ref, b1_ref, w2_ref, b2_ref,
                gamma_ref, beta_ref, o_ref, *, k1, k2, pad1):
    """One block of Bb batch elements per grid step.

    xpad_ref : (Bb, T + k1 - 1, d_in)   time-padded input (also holds residual)
    w1_ref   : (k1 * d_in, d_hid)       conv1 taps, flattened
    b1_ref   : (1, d_hid)
    w2_ref   : (k2 * d_hid, d_in)       conv2 taps, flattened
    b2_ref   : (1, d_in)
    gamma_ref, beta_ref : (1, d_in)     LayerNorm affine
    o_ref    : (Bb, T, d_in)
    """
    Bb = o_ref.shape[0]
    T = o_ref.shape[1]
    d_in = o_ref.shape[2]
    d_hid = w1_ref.shape[1]

    xpad = xpad_ref[...]                       # (Bb, Tp, d_in), native dtype

    # Residual = center window of the padded tile (no second HBM read of x).
    resid = xpad[:, pad1:pad1 + T, :]          # (Bb, T, d_in)

    # ---- conv1 (d_in -> d_hid): K1 taps fused into one wide-K matmul ----
    if k1 == 1:
        x_cat = resid                          # (Bb, T, d_in)
    else:
        x_cat = jnp.concatenate(
            [xpad[:, k:k + T, :] for k in range(k1)], axis=-1)  # (Bb, T, k1*d_in)
    x2 = x_cat.reshape(Bb * T, k1 * d_in)      # row-pack batch*time for the MXU
    h = jnp.dot(x2, w1_ref[...], preferred_element_type=jnp.float32)
    h = h + b1_ref[...].astype(jnp.float32)
    h = jnp.maximum(h, 0.0)                    # ReLU, (Bb*T, d_hid) fp32

    # ---- conv2 (d_hid -> d_in) ----
    if k2 == 1:
        # Fast path (FastSpeech2 default kernel_size=(9,1)): plain matmul,
        # no scratch buffer, no zero-fill.
        y = jnp.dot(h.astype(w2_ref.dtype), w2_ref[...],
                    preferred_element_type=jnp.float32)
    else:
        pad2 = (k2 - 1) // 2
        h3 = h.reshape(Bb, T, d_hid)
        hpad = jnp.pad(h3, ((0, 0), (pad2, (k2 - 1) - pad2), (0, 0)))
        h_cat = jnp.concatenate(
            [hpad[:, k:k + T, :] for k in range(k2)], axis=-1)  # (Bb, T, k2*d_hid)
        y = jnp.dot(h_cat.reshape(Bb * T, k2 * d_hid).astype(w2_ref.dtype),
                    w2_ref[...], preferred_element_type=jnp.float32)
    y = y + b2_ref[...].astype(jnp.float32)    # (Bb*T, d_in)

    # TODO(synk): nn.Dropout(p) in training mode is stochastic; eval-mode
    # forward (identity) is implemented here.

    # ---- residual add + LayerNorm over last dim (d_in), fp32 math ----
    z = y + resid.reshape(Bb * T, d_in).astype(jnp.float32)
    mean = jnp.mean(z, axis=-1, keepdims=True)
    var = jnp.mean((z - mean) * (z - mean), axis=-1, keepdims=True)
    zn = (z - mean) * jax.lax.rsqrt(var + LN_EPS)
    out = zn * gamma_ref[...].astype(jnp.float32) + beta_ref[...].astype(jnp.float32)
    o_ref[...] = out.reshape(Bb, T, d_in).astype(o_ref.dtype)


@functools.partial(jax.jit, static_argnames=("kernel_size",))
def positionwise_feed_forward(x, w1, b1, w2, b2, gamma, beta, *, kernel_size):
    """x: (B, T, d_in).  w1: (k1, d_in, d_hid), w2: (k2, d_hid, d_in).
    Returns (B, T, d_in)."""
    B, T, d_in = x.shape
    k1, k2 = kernel_size
    # PyTorch Conv1d with padding=(k-1)//2 only preserves length for odd k;
    # the original module relies on that for the residual add.
    assert k1 % 2 == 1 and k2 % 2 == 1, "kernel sizes must be odd"
    d_hid = w1.shape[2]
    pad1 = (k1 - 1) // 2

    # Glue: zero-pad the time axis for conv1 outside the kernel.  The padded
    # copy also carries the residual (center window), so x itself is not
    # passed to the kernel a second time.
    x_pad = jnp.pad(x, ((0, 0), (pad1, pad1), (0, 0)))
    Tp = T + k1 - 1

    # Flatten conv taps so each conv is a single wide-K matmul.
    w1_flat = w1.reshape(k1 * d_in, d_hid)
    w2_flat = w2.reshape(k2 * d_hid, d_in)
    b1_2d = b1.reshape(1, d_hid)
    b2_2d = b2.reshape(1, d_in)
    gamma_2d = gamma.reshape(1, d_in)
    beta_2d = beta.reshape(1, d_in)

    # Pack enough batch elements per grid step to fill the MXU M dimension
    # (target ~512 rows) while amortizing per-step overhead.
    # TODO(synk): for production T (1-2k) on v7x (64 MiB VMEM), additionally
    # tile the time axis with a k1-halo instead of whole-T blocks.
    target_rows = 512
    bb = max(1, min(B, pl.cdiv(target_rows, T)))
    while B % bb:
        bb -= 1

    grid_spec = pltpu.PrefetchScalarGridSpec(
        num_scalar_prefetch=0,
        grid=(B // bb,),
        in_specs=[
            pl.BlockSpec((bb, Tp, d_in), lambda b: (b, 0, 0)),
            pl.BlockSpec((k1 * d_in, d_hid), lambda b: (0, 0)),
            pl.BlockSpec((1, d_hid), lambda b: (0, 0)),
            pl.BlockSpec((k2 * d_hid, d_in), lambda b: (0, 0)),
            pl.BlockSpec((1, d_in), lambda b: (0, 0)),
            pl.BlockSpec((1, d_in), lambda b: (0, 0)),
            pl.BlockSpec((1, d_in), lambda b: (0, 0)),
        ],
        out_specs=pl.BlockSpec((bb, T, d_in), lambda b: (b, 0, 0)),
    )

    kernel = functools.partial(_pff_kernel, k1=k1, k2=k2, pad1=pad1)

    return pl.pallas_call(
        kernel,
        out_shape=jax.ShapeDtypeStruct((B, T, d_in), x.dtype),
        grid_spec=grid_spec,
        compiler_params=pltpu.CompilerParams(
            dimension_semantics=("parallel",)),   # batch blocks are independent
    )(x_pad, w1_flat, b1_2d, w2_flat, b2_2d, gamma_2d, beta_2d)


def reference(x, w1, b1, w2, b2, gamma, beta, kernel_size):
    """Pure-JAX reference mirroring the PyTorch forward (eval mode)."""
    k1, k2 = kernel_size
    h = jax.lax.conv_general_dilated(
        x, w1, window_strides=(1,), padding=[((k1 - 1) // 2, (k1 - 1) // 2)],
        dimension_numbers=("NWC", "WIO", "NWC")) + b1
    h = jnp.maximum(h, 0.0)
    y = jax.lax.conv_general_dilated(
        h, w2, window_strides=(1,), padding=[((k2 - 1) // 2, (k2 - 1) // 2)],
        dimension_numbers=("NWC", "WIO", "NWC")) + b2
    z = y + x
    mean = jnp.mean(z, axis=-1, keepdims=True)
    var = jnp.mean((z - mean) ** 2, axis=-1, keepdims=True)
    zn = (z - mean) * jax.lax.rsqrt(var + LN_EPS)
    return zn * gamma + beta


if __name__ == "__main__":
    # Small shapes consistent with the module (FastSpeech2-style FFT block).
    B, T, d_in, d_hid = 2, 16, 32, 64
    kernel_size = (9, 1)

    key = jax.random.PRNGKey(0)
    kx, kw1, kb1, kw2, kb2 = jax.random.split(key, 5)

    x = jax.random.normal(kx, (B, T, d_in), dtype=jnp.float32)
    # Conv1d weights stored as (K, C_in, C_out); deterministic synthetic init.
    w1 = jax.random.normal(kw1, (kernel_size[0], d_in, d_hid), jnp.float32) * 0.05
    b1 = jax.random.normal(kb1, (d_hid,), jnp.float32) * 0.05
    w2 = jax.random.normal(kw2, (kernel_size[1], d_hid, d_in), jnp.float32) * 0.05
    b2 = jax.random.normal(kb2, (d_in,), jnp.float32) * 0.05
    gamma = jnp.ones((d_in,), jnp.float32)   # LayerNorm weight
    beta = jnp.zeros((d_in,), jnp.float32)   # LayerNorm bias

    out = positionwise_feed_forward(x, w1, b1, w2, b2, gamma, beta,
                                    kernel_size=kernel_size)
    out = jax.block_until_ready(out)

    ref = reference(x, w1, b1, w2, b2, gamma, beta, kernel_size)
    assert out.shape == (B, T, d_in)
    assert jnp.allclose(out, ref, atol=1e-2, rtol=1e-2), \
        float(jnp.max(jnp.abs(out - ref)))

    print("KERNEL_OK")
</pallas_src>

<mosaic_0001>
module attributes {stable_mosaic.version = 11 : i64} {
  func.func @_pff_kernel(%arg0: i32, %arg1: memref<2x24x32xf32, #tpu.memory_space<vmem>>, %arg2: memref<288x64xf32, #tpu.memory_space<vmem>>, %arg3: memref<1x64xf32, #tpu.memory_space<vmem>>, %arg4: memref<64x32xf32, #tpu.memory_space<vmem>>, %arg5: memref<1x32xf32, #tpu.memory_space<vmem>>, %arg6: memref<1x32xf32, #tpu.memory_space<vmem>>, %arg7: memref<1x32xf32, #tpu.memory_space<vmem>>, %arg8: memref<2x16x32xf32, #tpu.memory_space<vmem>>) attributes {dimension_semantics = [#tpu.dimension_semantics<parallel>], iteration_bounds = array<i64: 1>, scalar_prefetch = 0 : i64, scratch_operands = 0 : i64, tpu.core_type = #tpu.core_type<tc>, window_params = [{transform_indices = @transform_0, window_bounds = array<i64: 2, 24, 32>}, {pipeline_mode = #tpu.pipeline_mode<synchronous>, transform_indices = @transform_1, window_bounds = array<i64: 288, 64>}, {pipeline_mode = #tpu.pipeline_mode<synchronous>, transform_indices = @transform_2, window_bounds = array<i64: 1, 64>}, {pipeline_mode = #tpu.pipeline_mode<synchronous>, transform_indices = @transform_3, window_bounds = array<i64: 64, 32>}, {pipeline_mode = #tpu.pipeline_mode<synchronous>, transform_indices = @transform_4, window_bounds = array<i64: 1, 32>}, {pipeline_mode = #tpu.pipeline_mode<synchronous>, transform_indices = @transform_5, window_bounds = array<i64: 1, 32>}, {pipeline_mode = #tpu.pipeline_mode<synchronous>, transform_indices = @transform_6, window_bounds = array<i64: 1, 32>}, {transform_indices = @transform_7, window_bounds = array<i64: 2, 16, 32>}]} {
    %c0 = arith.constant 0 : index
    %c0_0 = arith.constant 0 : index
    %c0_1 = arith.constant 0 : index
    %0 = vector.load %arg1[%c0, %c0_0, %c0_1] : memref<2x24x32xf32, #tpu.memory_space<vmem>>, vector<2x24x32xf32>
    %1 = vector.extract_strided_slice %0 {offsets = [0, 4, 0], sizes = [2, 16, 32], strides = [1, 1, 1]} : vector<2x24x32xf32> to vector<2x16x32xf32>
    %2 = vector.extract_strided_slice %0 {offsets = [0, 0, 0], sizes = [2, 16, 32], strides = [1, 1, 1]} : vector<2x24x32xf32> to vector<2x16x32xf32>
    %3 = vector.extract_strided_slice %0 {offsets = [0, 1, 0], sizes = [2, 16, 32], strides = [1, 1, 1]} : vector<2x24x32xf32> to vector<2x16x32xf32>
    %4 = vector.extract_strided_slice %0 {offsets = [0, 2, 0], sizes = [2, 16, 32], strides = [1, 1, 1]} : vector<2x24x32xf32> to vector<2x16x32xf32>
    %5 = vector.extract_strided_slice %0 {offsets = [0, 3, 0], sizes = [2, 16, 32], strides = [1, 1, 1]} : vector<2x24x32xf32> to vector<2x16x32xf32>
    %6 = vector.extract_strided_slice %0 {offsets = [0, 4, 0], sizes = [2, 16, 32], strides = [1, 1, 1]} : vector<2x24x32xf32> to vector<2x16x32xf32>
    %7 = vector.extract_strided_slice %0 {offsets = [0, 5, 0], sizes = [2, 16, 32], strides = [1, 1, 1]} : vector<2x24x32xf32> to vector<2x16x32xf32>
    %8 = vector.extract_strided_slice %0 {offsets = [0, 6, 0], sizes = [2, 16, 32], strides = [1, 1, 1]} : vector<2x24x32xf32> to vector<2x16x32xf32>
    %9 = vector.extract_strided_slice %0 {offsets = [0, 7, 0], sizes = [2, 16, 32], strides = [1, 1, 1]} : vector<2x24x32xf32> to vector<2x16x32xf32>
    %10 = vector.extract_strided_slice %0 {offsets = [0, 8, 0], sizes = [2, 16, 32], strides = [1, 1, 1]} : vector<2x24x32xf32> to vector<2x16x32xf32>
    %11 = tpu.concatenate %2, %3, %4, %5, %6, %7, %8, %9, %10 in 2 : vector<2x16x32xf32>, vector<2x16x32xf32>, vector<2x16x32xf32>, vector<2x16x32xf32>, vector<2x16x32xf32>, vector<2x16x32xf32>, vector<2x16x32xf32>, vector<2x16x32xf32>, vector<2x16x32xf32> -> vector<2x16x288xf32>
    %12 = vector.shape_cast %11 : vector<2x16x288xf32> to vector<32x288xf32>
    %c0_2 = arith.constant 0 : index
    %c0_3 = arith.constant 0 : index
    %13 = vector.load %arg2[%c0_2, %c0_3] : memref<288x64xf32, #tpu.memory_space<vmem>>, vector<288x64xf32>
    %cst = arith.constant dense<0.000000e+00> : vector<32x64xf32>
    %14 = tpu.matmul %12, %13, %cst {dimension_numbers = #tpu.dot_dimension_numbers<[1], [0], [0], [1], [0, 0, 1, 1], [], []>} : vector<32x288xf32>, vector<288x64xf32>, vector<32x64xf32> -> vector<32x64xf32>
    %c0_4 = arith.constant 0 : index
    %c0_5 = arith.constant 0 : index
    %15 = vector.load %arg3[%c0_4, %c0_5] : memref<1x64xf32, #tpu.memory_space<vmem>>, vector<1x64xf32>
    %16 = vector.broadcast %15 : vector<1x64xf32> to vector<32x64xf32>
    %17 = arith.addf %14, %16 : vector<32x64xf32>
    %cst_6 = arith.constant 0.000000e+00 : f32
    %18 = vector.broadcast %cst_6 : f32 to vector<32x64xf32>
    %19 = arith.maximumf %17, %18 : vector<32x64xf32>
    %c0_7 = arith.constant 0 : index
    %c0_8 = arith.constant 0 : index
    %20 = vector.load %arg4[%c0_7, %c0_8] : memref<64x32xf32, #tpu.memory_space<vmem>>, vector<64x32xf32>
    %cst_9 = arith.constant dense<0.000000e+00> : vector<32x32xf32>
    %21 = tpu.matmul %19, %20, %cst_9 {dimension_numbers = #tpu.dot_dimension_numbers<[1], [0], [0], [1], [0, 0, 1, 1], [], []>} : vector<32x64xf32>, vector<64x32xf32>, vector<32x32xf32> -> vector<32x32xf32>
    %c0_10 = arith.constant 0 : index
    %c0_11 = arith.constant 0 : index
    %22 = vector.load %arg5[%c0_10, %c0_11] : memref<1x32xf32, #tpu.memory_space<vmem>>, vector<1x32xf32>
    %23 = vector.broadcast %22 : vector<1x32xf32> to vector<32x32xf32>
    %24 = arith.addf %21, %23 : vector<32x32xf32>
    %25 = vector.shape_cast %1 : vector<2x16x32xf32> to vector<32x32xf32>
    %26 = arith.addf %24, %25 : vector<32x32xf32>
    %cst_12 = arith.constant dense<0.000000e+00> : vector<32xf32>
    %27 = vector.multi_reduction <add>, %26, %cst_12 [1] : vector<32x32xf32> to vector<32xf32>
    %28 = vector.shape_cast %27 : vector<32xf32> to vector<32x1xf32>
    %cst_13 = arith.constant 3.200000e+01 : f32
    %29 = vector.broadcast %cst_13 : f32 to vector<32x1xf32>
    %30 = arith.divf %28, %29 : vector<32x1xf32>
    %31 = vector.broadcast %30 : vector<32x1xf32> to vector<32x32xf32>
    %32 = arith.subf %26, %31 : vector<32x32xf32>
    %33 = vector.broadcast %30 : vector<32x1xf32> to vector<32x32xf32>
    %34 = arith.subf %26, %33 : vector<32x32xf32>
    %35 = arith.mulf %32, %34 : vector<32x32xf32>
    %cst_14 = arith.constant dense<0.000000e+00> : vector<32xf32>
    %36 = vector.multi_reduction <add>, %35, %cst_14 [1] : vector<32x32xf32> to vector<32xf32>
    %37 = vector.shape_cast %36 : vector<32xf32> to vector<32x1xf32>
    %cst_15 = arith.constant 3.200000e+01 : f32
    %38 = vector.broadcast %cst_15 : f32 to vector<32x1xf32>
    %39 = arith.divf %37, %38 : vector<32x1xf32>
    %40 = vector.broadcast %30 : vector<32x1xf32> to vector<32x32xf32>
    %41 = arith.subf %26, %40 : vector<32x32xf32>
    %cst_16 = arith.constant 9.99999974E-6 : f32
    %42 = vector.broadcast %cst_16 : f32 to vector<32x1xf32>
    %43 = arith.addf %39, %42 : vector<32x1xf32>
    %44 = math.rsqrt %43 : vector<32x1xf32>
    %45 = vector.broadcast %44 : vector<32x1xf32> to vector<32x32xf32>
    %46 = arith.mulf %41, %45 : vector<32x32xf32>
    %c0_17 = arith.constant 0 : index
    %c0_18 = arith.constant 0 : index
    %47 = vector.load %arg6[%c0_17, %c0_18] : memref<1x32xf32, #tpu.memory_space<vmem>>, vector<1x32xf32>
    %48 = vector.broadcast %47 : vector<1x32xf32> to vector<32x32xf32>
    %49 = arith.mulf %46, %48 : vector<32x32xf32>
    %c0_19 = arith.constant 0 : index
    %c0_20 = arith.constant 0 : index
    %50 = vector.load %arg7[%c0_19, %c0_20] : memref<1x32xf32, #tpu.memory_space<vmem>>, vector<1x32xf32>
    %51 = vector.broadcast %50 : vector<1x32xf32> to vector<32x32xf32>
    %52 = arith.addf %49, %51 : vector<32x32xf32>
    %53 = vector.shape_cast %52 : vector<32x32xf32> to vector<2x16x32xf32>
    %c0_21 = arith.constant 0 : index
    %c0_22 = arith.constant 0 : index
    %c0_23 = arith.constant 0 : index
    %54 = vector.load %arg8[%c0_21, %c0_22, %c0_23] : memref<2x16x32xf32, #tpu.memory_space<vmem>>, vector<2x16x32xf32>
    tpu.vector_store %arg8[%c0_21, %c0_22, %c0_23], %53 {strides = array<i32>} : memref<2x16x32xf32, #tpu.memory_space<vmem>>, vector<2x16x32xf32>,
    return
  }
  func.func @transform_0(%arg0: i32) -> (i32, i32, i32) {
    %c0_i32 = arith.constant 0 : i32
    %c0_i32_0 = arith.constant 0 : i32
    %c0_i32_1 = arith.constant 0 : i32
    return %arg0, %c0_i32, %c0_i32_0 : i32, i32, i32
  }
  func.func @transform_1(%arg0: i32) -> (i32, i32) {
    %c0_i32 = arith.constant 0 : i32
    %c0_i32_0 = arith.constant 0 : i32
    %c0_i32_1 = arith.constant 0 : i32
    return %c0_i32, %c0_i32_0 : i32, i32
  }
  func.func @transform_2(%arg0: i32) -> (i32, i32) {
    %c0_i32 = arith.constant 0 : i32
    %c0_i32_0 = arith.constant 0 : i32
    %c0_i32_1 = arith.constant 0 : i32
    return %c0_i32, %c0_i32_0 : i32, i32
  }
  func.func @transform_3(%arg0: i32) -> (i32, i32) {
    %c0_i32 = arith.constant 0 : i32
    %c0_i32_0 = arith.constant 0 : i32
    %c0_i32_1 = arith.constant 0 : i32
    return %c0_i32, %c0_i32_0 : i32, i32
  }
  func.func @transform_4(%arg0: i32) -> (i32, i32) {
    %c0_i32 = arith.constant 0 : i32
    %c0_i32_0 = arith.constant 0 : i32
    %c0_i32_1 = arith.constant 0 : i32
    return %c0_i32, %c0_i32_0 : i32, i32
  }
  func.func @transform_5(%arg0: i32) -> (i32, i32) {
    %c0_i32 = arith.constant 0 : i32
    %c0_i32_0 = arith.constant 0 : i32
    %c0_i32_1 = arith.constant 0 : i32
    return %c0_i32, %c0_i32_0 : i32, i32
  }
  func.func @transform_6(%arg0: i32) -> (i32, i32) {
    %c0_i32 = arith.constant 0 : i32
    %c0_i32_0 = arith.constant 0 : i32
    %c0_i32_1 = arith.constant 0 : i32
    return %c0_i32, %c0_i32_0 : i32, i32
  }
  func.func @transform_7(%arg0: i32) -> (i32, i32, i32) {
    %c0_i32 = arith.constant 0 : i32
    %c0_i32_0 = arith.constant 0 : i32
    %c0_i32_1 = arith.constant 0 : i32
    return %arg0, %c0_i32, %c0_i32_0 : i32, i32, i32
  }
}

</mosaic_0001>

<llo_original>
// kernel: positionwise_feed_forward.1
$region0: #{positionwise_feed_forward.1}
  #allocation0 [shape = 'u32[]', space=smem, size = 0x4, offset = 0x4, fixed_abs, tag = 'smem constant byte address 0x4 - core index']
  #allocation1 [shape = 'u32[72,128]{1,0:T(1,128)}', space=vmem, size = 0x9000, scoped, tag = 'internal scratch']
  %s0 = inlined_call_operand.vmem [shape: f32[2,24,32], index: 0, kind: input, shape index: {}]
  %s1 = inlined_call_operand.hbm [shape: f32[288,64], index: 1, kind: input, shape index: {}]
  %s2 = inlined_call_operand.vmem [shape: f32[1,64], index: 2, kind: input, shape index: {}]
  %s3 = inlined_call_operand.vmem [shape: f32[64,32], index: 3, kind: input, shape index: {}]
  %s4 = inlined_call_operand.vmem [shape: f32[1,32], index: 4, kind: input, shape index: {}]
  %s5 = inlined_call_operand.vmem [shape: f32[1,32], index: 5, kind: input, shape index: {}]
  %s6 = inlined_call_operand.vmem [shape: f32[1,32], index: 6, kind: input, shape index: {}]
  %s7 = inlined_call_operand.hbm [shape: f32[2,16,32], index: 7, kind: output, shape index: {}]
  %s8 = sld [smem:[#allocation0]]
  $region42: #{positionwise_feed_forward.1} parent=0
    _
  %s10 = ssub.s32 1, %s8
  %s11 = scalar_select 0, %s10, %s8
  $region1: #{positionwise_feed_forward.1} parent=0
    #allocation2 [shape = 'u8[147456]{0}', space=vmem, size = 0x24000, scoped, tag = 'input window, operand 1, single buffered']
    #allocation3 [shape = 's32[1]{0}', space=sflag, size = 0x4, scoped, tag = 'scoped memory for positionwise_feed_forward.1']
    #allocation4 [shape = 's32[1]{0}', space=sflag, size = 0x4, scoped, tag = 'scoped memory for positionwise_feed_forward.1']
    #allocation5 [shape = 'u8[16384]{0}', space=vmem, size = 0x4000, scoped, tag = 'output window, operand 0, single buffered']
    %12 = vsyncpa [#allocation3], 0
    %13 = vsyncpa [#allocation4], 0
    // Predicated region
    $region2: #{positionwise_feed_forward.1} parent=1 // pred_check
      _
    $region3: #{positionwise_feed_forward.1} parent=1 // pred_check_branch
      %15 = sbr.rel (0) target = $region5
    $region4: #{positionwise_feed_forward.1} parent=1 // pred_region
      _
    $region5: #{positionwise_feed_forward.1} parent=1 // pred_fallthru
      _
    // Predicated region
    $region6: #{positionwise_feed_forward.1} parent=1 // pred_check
      _
    $region7: #{positionwise_feed_forward.1} parent=1 // pred_check_branch
      %17 = sbr.rel (0) target = $region9
    $region8: #{positionwise_feed_forward.1} parent=1 // pred_region
      %19 = vsyncadd [#allocation3], 0
      %s20 = sshll.u32 %s1, 4
      %s21 = int_to_ptr.hbm [resolvable:$true] %s20
      %s22 = sshll.u32 [#allocation2], 4
      %s23 = int_to_ptr.vmem [resolvable:$true] %s22
      %28 = dma.hbm_to_vmem [thread:$0]  %s21, 4608, %s23, [#allocation3], 128, 128, 8
    $region9: #{positionwise_feed_forward.1} parent=1 // pred_fallthru
      _
    // Predicated region
    $region10: #{positionwise_feed_forward.1} parent=1 // pred_check
      _
    $region11: #{positionwise_feed_forward.1} parent=1 // pred_check_branch
      %30 = sbr.rel (0) target = $region13
    $region12: #{positionwise_feed_forward.1} parent=1 // pred_region
      _
    $region13: #{positionwise_feed_forward.1} parent=1 // pred_fallthru
      _
    // Predicated region
    $region14: #{positionwise_feed_forward.1} parent=1 // pred_check
      _
    $region15: #{positionwise_feed_forward.1} parent=1 // pred_check_branch
      %32 = sbr.rel (0) target = $region17
    $region16: #{positionwise_feed_forward.1} parent=1 // pred_region
      _
    $region17: #{positionwise_feed_forward.1} parent=1 // pred_fallthru
      _
    // Predicated region
    $region18: #{positionwise_feed_forward.1} parent=1 // pred_check
      _
    $region19: #{positionwise_feed_forward.1} parent=1 // pred_check_branch
      %34 = sbr.rel (0) target = $region21
    $region20: #{positionwise_feed_forward.1} parent=1 // pred_region
      _
    $region21: #{positionwise_feed_forward.1} parent=1 // pred_fallthru
      _
    // Predicated region
    $region22: #{positionwise_feed_forward.1} parent=1 // pred_check
      _
    $region23: #{positionwise_feed_forward.1} parent=1 // pred_check_branch
      %36 = sbr.rel (0) target = $region25
    $region24: #{positionwise_feed_forward.1} parent=1 // pred_region
      _
    $region25: #{positionwise_feed_forward.1} parent=1 // pred_fallthru
      _
    // Predicated region
    $region26: #{positionwise_feed_forward.1} parent=1 // pred_check
      _
    $region27: #{positionwise_feed_forward.1} parent=1 // pred_check_branch
      %38 = sbr.rel (0) target = $region29
    $region28: #{positionwise_feed_forward.1} parent=1 // pred_region
      _
    $region29: #{positionwise_feed_forward.1} parent=1 // pred_fallthru
      _
    // Predicated region
    $region30: #{positionwise_feed_forward.1} parent=1 // pred_check
      _
    $region31: #{positionwise_feed_forward.1} parent=1 // pred_check_branch
      %40 = sbr.rel (0) target = $region33
    $region32: #{positionwise_feed_forward.1} parent=1 // pred_region
      %42 = dma.done [#allocation3], 4608
    $region33: #{positionwise_feed_forward.1} parent=1 // pred_fallthru
      _
    %v43 = vld [vmem:[%s0] sm:$0xff]
    %v44 = vld [vmem:[%s0 + $0x8] sm:$0xff]
    %v45 = vld [vmem:[%s0 + $0x10] sm:$0xff]
    %v46 = vld [vmem:[%s0 + $0x18] sm:$0xff]
    %v47 = vld [vmem:[%s0 + $0x20] sm:$0xff]
    %v48 = vld [vmem:[%s0 + $0x28] sm:$0xff]
    %vm55 = vcmask 1046528
    %v56 = vrot.slane %v43, 1
    %v57 = vrot.slane %v44, 1
    %v58 = vsel %vm55, %v56, %v57
    %v59 = vrot.slane %v45, 1
    %v60 = vsel %vm55, %v57, %v59
    %v61 = vrot.slane %v46, 1
    %v62 = vrot.slane %v47, 1
    %v63 = vsel %vm55, %v61, %v62
    %v64 = vrot.slane %v48, 1
    %v65 = vsel %vm55, %v62, %v64
    %66 = vrot.lane.b32.xlu0 %v58, 32
    %v67 = vpop.permute.xlu0 %66
    %68 = vrot.lane.b32.xlu0 %v60, 32
    %v69 = vpop.permute.xlu0 %68
    %70 = vrot.lane.b32.xlu0 %v63, 32
    %v71 = vpop.permute.xlu0 %70
    %72 = vrot.lane.b32.xlu0 %v65, 32
    %v73 = vpop.permute.xlu0 %72
    %vm78 = vcmask 1045504
    %v79 = vrot.slane %v43, 2
    %v80 = vrot.slane %v44, 2
    %v81 = vsel %vm78, %v79, %v80
    %v82 = vrot.slane %v45, 2
    %v83 = vsel %vm78, %v80, %v82
    %v84 = vrot.slane %v46, 2
    %v85 = vrot.slane %v47, 2
    %v86 = vsel %vm78, %v84, %v85
    %v87 = vrot.slane %v48, 2
    %v88 = vsel %vm78, %v85, %v87
    %89 = vrot.lane.b32.xlu0 %v81, 64
    %v90 = vpop.permute.xlu0 %89
    %91 = vrot.lane.b32.xlu0 %v83, 64
    %v92 = vpop.permute.xlu0 %91
    %93 = vrot.lane.b32.xlu0 %v86, 64
    %v94 = vpop.permute.xlu0 %93
    %95 = vrot.lane.b32.xlu0 %v88, 64
    %v96 = vpop.permute.xlu0 %95
    %vm101 = vcmask 1044480
    %v102 = vrot.slane %v43, 3
    %v103 = vrot.slane %v44, 3
    %v104 = vsel %vm101, %v102, %v103
    %v105 = vrot.slane %v45, 3
    %v106 = vsel %vm101, %v103, %v105
    %v107 = vrot.slane %v46, 3
    %v108 = vrot.slane %v47, 3
    %v109 = vsel %vm101, %v107, %v108
    %v110 = vrot.slane %v48, 3
    %v111 = vsel %vm101, %v108, %v110
    %112 = vrot.lane.b32.xlu0 %v104, 96
    %v113 = vpop.permute.xlu0 %112
    %114 = vrot.lane.b32.xlu0 %v106, 96
    %v115 = vpop.permute.xlu0 %114
    %116 = vrot.lane.b32.xlu0 %v109, 96
    %v117 = vpop.permute.xlu0 %116
    %118 = vrot.lane.b32.xlu0 %v111, 96
    %v119 = vpop.permute.xlu0 %118
    %vm124 = vcmask 1043456
    %v125 = vrot.slane %v43, 4
    %v126 = vrot.slane %v44, 4
    %v127 = vsel %vm124, %v125, %v126
    %v128 = vrot.slane %v45, 4
    %v129 = vsel %vm124, %v126, %v128
    %v130 = vrot.slane %v46, 4
    %v131 = vrot.slane %v47, 4
    %v132 = vsel %vm124, %v130, %v131
    %v133 = vrot.slane %v48, 4
    %v134 = vsel %vm124, %v131, %v133
    %vm139 = vcmask 1042432
    %v140 = vrot.slane %v43, 5
    %v141 = vrot.slane %v44, 5
    %v142 = vsel %vm139, %v140, %v141
    %v143 = vrot.slane %v45, 5
    %v144 = vsel %vm139, %v141, %v143
    %v145 = vrot.slane %v46, 5
    %v146 = vrot.slane %v47, 5
    %v147 = vsel %vm139, %v145, %v146
    %v148 = vrot.slane %v48, 5
    %v149 = vsel %vm139, %v146, %v148
    %150 = vrot.lane.b32.xlu0 %v142, 32
    %v151 = vpop.permute.xlu0 %150
    %152 = vrot.lane.b32.xlu0 %v144, 32
    %v153 = vpop.permute.xlu0 %152
    %154 = vrot.lane.b32.xlu0 %v147, 32
    %v155 = vpop.permute.xlu0 %154
    %156 = vrot.lane.b32.xlu0 %v149, 32
    %v157 = vpop.permute.xlu0 %156
    %vm162 = vcmask 1041408
    %v163 = vrot.slane %v43, 6
    %v164 = vrot.slane %v44, 6
    %v165 = vsel %vm162, %v163, %v164
    %v166 = vrot.slane %v45, 6
    %v167 = vsel %vm162, %v164, %v166
    %v168 = vrot.slane %v46, 6
    %v169 = vrot.slane %v47, 6
    %v170 = vsel %vm162, %v168, %v169
    %v171 = vrot.slane %v48, 6
    %v172 = vsel %vm162, %v169, %v171
    %173 = vrot.lane.b32.xlu0 %v165, 64
    %v174 = vpop.permute.xlu0 %173
    %175 = vrot.lane.b32.xlu0 %v167, 64
    %v176 = vpop.permute.xlu0 %175
    %177 = vrot.lane.b32.xlu0 %v170, 64
    %v178 = vpop.permute.xlu0 %177
    %179 = vrot.lane.b32.xlu0 %v172, 64
    %v180 = vpop.permute.xlu0 %179
    %vm185 = vcmask 1040384
    %v186 = vrot.slane %v43, 7
    %v187 = vrot.slane %v44, 7
    %v188 = vsel %vm185, %v186, %v187
    %v189 = vrot.slane %v45, 7
    %v190 = vsel %vm185, %v187, %v189
    %v191 = vrot.slane %v46, 7
    %v192 = vrot.slane %v47, 7
    %v193 = vsel %vm185, %v191, %v192
    %v194 = vrot.slane %v48, 7
    %v195 = vsel %vm185, %v192, %v194
    %196 = vrot.lane.b32.xlu0 %v188, 96
    %v197 = vpop.permute.xlu0 %196
    %198 = vrot.lane.b32.xlu0 %v190, 96
    %v199 = vpop.permute.xlu0 %198
    %200 = vrot.lane.b32.xlu0 %v193, 96
    %v201 = vpop.permute.xlu0 %200
    %202 = vrot.lane.b32.xlu0 %v195, 96
    %v203 = vpop.permute.xlu0 %202
    %vm208 = vcmask 261120
    %v209 = vsel %vm208, %v43, %v67
    %v210 = vsel %vm208, %v44, %v69
    %v211 = vsel %vm208, %v46, %v71
    %v212 = vsel %vm208, %v47, %v73
    %vm213 = vcmask 523264
    %v214 = vsel %vm213, %v209, %v90
    %v215 = vsel %vm213, %v210, %v92
    %v216 = vsel %vm213, %v211, %v94
    %v217 = vsel %vm213, %v212, %v96
    %vm218 = vcmask 785408
    %v219 = vsel %vm218, %v214, %v113
    %v220 = vsel %vm218, %v215, %v115
    %v221 = vsel %vm218, %v216, %v117
    %v222 = vsel %vm218, %v217, %v119
    %v223 = vsel %vm208, %v127, %v151
    %v224 = vsel %vm208, %v129, %v153
    %v225 = vsel %vm208, %v132, %v155
    %v226 = vsel %vm208, %v134, %v157
    %v227 = vsel %vm213, %v223, %v174
    %v228 = vsel %vm213, %v224, %v176
    %v229 = vsel %vm213, %v225, %v178
    %v230 = vsel %vm213, %v226, %v180
    %v231 = vsel %vm218, %v227, %v197
    %v232 = vsel %vm218, %v228, %v199
    %v233 = vsel %vm218, %v229, %v201
    %v234 = vsel %vm218, %v230, %v203
    %v235 = vld [vmem:[#allocation2] sm:$0xff]
    %v236 = vld [vmem:[#allocation2 + $0x8] sm:$0xff]
    %v237 = vld [vmem:[#allocation2 + $0x10] sm:$0xff]
    %v238 = vld [vmem:[#allocation2 + $0x18] sm:$0xff]
    %v239 = vld [vmem:[#allocation2 + $0x20] sm:$0xff]
    %v240 = vld [vmem:[#allocation2 + $0x28] sm:$0xff]
    %v241 = vld [vmem:[#allocation2 + $0x30] sm:$0xff]
    %v242 = vld [vmem:[#allocation2 + $0x38] sm:$0xff]
    %v243 = vld [vmem:[#allocation2 + $0x40] sm:$0xff]
    %v244 = vld [vmem:[#allocation2 + $0x48] sm:$0xff]
    %v245 = vld [vmem:[#allocation2 + $0x50] sm:$0xff]
    %v246 = vld [vmem:[#allocation2 + $0x58] sm:$0xff]
    %v247 = vld [vmem:[#allocation2 + $0x60] sm:$0xff]
    %v248 = vld [vmem:[#allocation2 + $0x68] sm:$0xff]
    %v249 = vld [vmem:[#allocation2 + $0x70] sm:$0xff]
    %v250 = vld [vmem:[#allocation2 + $0x78] sm:$0xff]
    %v251 = vld [vmem:[#allocation2 + $0x80] sm:$0xff]
    %v252 = vld [vmem:[#allocation2 + $0x88] sm:$0xff]
    %v253 = vld [vmem:[#allocation2 + $0x90] sm:$0xff]
    %v254 = vld [vmem:[#allocation2 + $0x98] sm:$0xff]
    %v255 = vld [vmem:[#allocation2 + $0xa0] sm:$0xff]
    %v256 = vld [vmem:[#allocation2 + $0xa8] sm:$0xff]
    %v257 = vld [vmem:[#allocation2 + $0xb0] sm:$0xff]
    %v258 = vld [vmem:[#allocation2 + $0xb8] sm:$0xff]
    %v259 = vld [vmem:[#allocation2 + $0xc0] sm:$0xff]
    %v260 = vld [vmem:[#allocation2 + $0xc8] sm:$0xff]
    %v261 = vld [vmem:[#allocation2 + $0xd0] sm:$0xff]
    %v262 = vld [vmem:[#allocation2 + $0xd8] sm:$0xff]
    %v263 = vld [vmem:[#allocation2 + $0xe0] sm:$0xff]
    %v264 = vld [vmem:[#allocation2 + $0xe8] sm:$0xff]
    %v265 = vld [vmem:[#allocation2 + $0xf0] sm:$0xff]
    %v266 = vld [vmem:[#allocation2 + $0xf8] sm:$0xff]
    %v267 = vld [vmem:[#allocation2 + $0x100] sm:$0xff]
    %v268 = vld [vmem:[#allocation2 + $0x108] sm:$0xff]
    %v269 = vld [vmem:[#allocation2 + $0x110] sm:$0xff]
    %v270 = vld [vmem:[#allocation2 + $0x118] sm:$0xff]
    %v271 = vld [vmem:[%s2] sm:$0x1]
    %v273 = vperm.slane %v271, 0
    %v275 = vsel %vm208, %v44, 0
    %v277 = vsel %vm208, %v45, 0
    %v279 = vsel %vm208, %v47, 0
    %v281 = vsel %vm208, %v48, 0
    %283 = vmatpush.msra.mxu0 %v250
    %284 = vmatpush.msra.mxu0 %v249
    %285 = vmatpush.msra.mxu0 %v248
    %286 = vmatpush.msra.mxu0 %v247
    %287 = vmatpush.msra.mxu0 %v246
    %288 = vmatpush.msra.mxu0 %v245
    %289 = vmatpush.msra.mxu0 %v244
    %290 = vmatpush.msra.mxu0 %v243
    %291 = vmatpush.msra.mxu0 %v242
    %292 = vmatpush.msra.mxu0 %v241
    %293 = vmatpush.msra.mxu0 %v240
    %294 = vmatpush.msra.mxu0 %v239
    %295 = vmatpush.msra.mxu0 %v238
    %296 = vmatpush.msra.mxu0 %v237
    %297 = vmatpush.msra.mxu0 %v236
    %298 = vmatpush.msra.mxu0 %v235
    %299 = vmatmul.f32.gmra.mxu0 %v219
    %v300 = vpop.f32.mrf.mxu0
    %v301 = vadd.f32 %v273, %v300
    %302 = vmatmul.f32.gmra.mxu0 %v220
    %v303 = vpop.f32.mrf.mxu0
    %v304 = vadd.f32 %v273, %v303
    %305 = vmatmul.f32.gmra.mxu0 %v221
    %v306 = vpop.f32.mrf.mxu0
    %v307 = vadd.f32 %v273, %v306
    %308 = vmatmul.f32.gmra.mxu0 %v222
    %v309 = vpop.f32.mrf.mxu0
    %v310 = vadd.f32 %v273, %v309
    %311 = vdwg.mxu0
    %312 = vmatpush.msra.mxu0 %v266
    %313 = vmatpush.msra.mxu0 %v265
    %314 = vmatpush.msra.mxu0 %v264
    %315 = vmatpush.msra.mxu0 %v263
    %316 = vmatpush.msra.mxu0 %v262
    %317 = vmatpush.msra.mxu0 %v261
    %318 = vmatpush.msra.mxu0 %v260
    %319 = vmatpush.msra.mxu0 %v259
    %320 = vmatpush.msra.mxu0 %v258
    %321 = vmatpush.msra.mxu0 %v257
    %322 = vmatpush.msra.mxu0 %v256
    %323 = vmatpush.msra.mxu0 %v255
    %324 = vmatpush.msra.mxu0 %v254
    %325 = vmatpush.msra.mxu0 %v253
    %326 = vmatpush.msra.mxu0 %v252
    %327 = vmatpush.msra.mxu0 %v251
    %328 = vmatmul.f32.gmra.mxu0 %v231
    %v329 = vpop.f32.mrf.mxu0
    %v330 = vadd.f32 %v301, %v329
    %331 = vmatmul.f32.gmra.mxu0 %v232
    %v332 = vpop.f32.mrf.mxu0
    %v333 = vadd.f32 %v304, %v332
    %334 = vmatmul.f32.gmra.mxu0 %v233
    %v335 = vpop.f32.mrf.mxu0
    %v336 = vadd.f32 %v307, %v335
    %337 = vmatmul.f32.gmra.mxu0 %v234
    %v338 = vpop.f32.mrf.mxu0
    %v339 = vadd.f32 %v310, %v338
    %340 = vdwg.mxu0
    %341 = vmatpush.msra.mxu0 0.0
    %342 = vmatpush.msra.mxu0 0.0
    %343 = vmatpush.msra.mxu0 0.0
    %344 = vmatpush.msra.mxu0 0.0
    %345 = vmatpush.msra.mxu0 0.0
    %346 = vmatpush.msra.mxu0 0.0
    %347 = vmatpush.msra.mxu0 0.0
    %348 = vmatpush.msra.mxu0 0.0
    %349 = vmatpush.msra.mxu0 0.0
    %350 = vmatpush.msra.mxu0 0.0
    %351 = vmatpush.msra.mxu0 0.0
    %352 = vmatpush.msra.mxu0 0.0
    %353 = vmatpush.msra.mxu0 %v270
    %354 = vmatpush.msra.mxu0 %v269
    %355 = vmatpush.msra.mxu0 %v268
    %356 = vmatpush.msra.mxu0 %v267
    %357 = vmatmul.f32.gmra.mxu0 %v275
    %v358 = vpop.f32.mrf.mxu0
    %v359 = vadd.f32 %v330, %v358
    %360 = vmatmul.f32.gmra.mxu0 %v277
    %v361 = vpop.f32.mrf.mxu0
    %v362 = vadd.f32 %v333, %v361
    %363 = vmatmul.f32.gmra.mxu0 %v279
    %v364 = vpop.f32.mrf.mxu0
    %v365 = vadd.f32 %v336, %v364
    %366 = vmatmul.f32.gmra.mxu0 %v281
    %v367 = vpop.f32.mrf.mxu0
    %v368 = vadd.f32 %v339, %v367
    %369 = vdwg.mxu0
    %v370 = vmax.f32 %v359, 0.0
    %v371 = vmax.f32 %v362, 0.0
    %v372 = vmax.f32 %v365, 0.0
    %v373 = vmax.f32 %v368, 0.0
    %v374 = vld [vmem:[%s3] sm:$0xff]
    %v375 = vld [vmem:[%s3 + $0x8] sm:$0xff]
    %v376 = vld [vmem:[%s3 + $0x10] sm:$0xff]
    %v377 = vld [vmem:[%s3 + $0x18] sm:$0xff]
    %v378 = vld [vmem:[%s3 + $0x20] sm:$0xff]
    %v379 = vld [vmem:[%s3 + $0x28] sm:$0xff]
    %v380 = vld [vmem:[%s3 + $0x30] sm:$0xff]
    %v381 = vld [vmem:[%s3 + $0x38] sm:$0xff]
    %v382 = vld [vmem:[%s4] sm:$0x1]
    %v384 = vperm.slane %v382, 0
    %v387 = vsel %vm213, %v370, 0
    %v390 = vsel %vm213, %v371, 0
    %v393 = vsel %vm213, %v372, 0
    %v396 = vsel %vm213, %v373, 0
    %398 = vmatpush.msra.mxu0 0.0
    %399 = vmatpush.msra.mxu0 0.0
    %400 = vmatpush.msra.mxu0 0.0
    %401 = vmatpush.msra.mxu0 0.0
    %402 = vmatpush.msra.mxu0 0.0
    %403 = vmatpush.msra.mxu0 0.0
    %404 = vmatpush.msra.mxu0 0.0
    %405 = vmatpush.msra.mxu0 0.0
    %406 = vmatpush.msra.mxu0 %v381
    %407 = vmatpush.msra.mxu0 %v380
    %408 = vmatpush.msra.mxu0 %v379
    %409 = vmatpush.msra.mxu0 %v378
    %410 = vmatpush.msra.mxu0 %v377
    %411 = vmatpush.msra.mxu0 %v376
    %412 = vmatpush.msra.mxu0 %v375
    %413 = vmatpush.msra.mxu0 %v374
    %414 = vmatmul.f32.gmra.mxu0 %v387
    %v415 = vpop.f32.mrf.mxu0
    %v416 = vadd.f32 %v384, %v415
    %417 = vmatmul.f32.gmra.mxu0 %v390
    %v418 = vpop.f32.mrf.mxu0
    %v419 = vadd.f32 %v384, %v418
    %420 = vmatmul.f32.gmra.mxu0 %v393
    %v421 = vpop.f32.mrf.mxu0
    %v422 = vadd.f32 %v384, %v421
    %423 = vmatmul.f32.gmra.mxu0 %v396
    %v424 = vpop.f32.mrf.mxu0
    %v425 = vadd.f32 %v384, %v424
    %426 = vdwg.mxu0
    %v427 = vadd.f32 %v416, %v127
    %v428 = vadd.f32 %v419, %v129
    %v429 = vadd.f32 %v422, %v132
    %v430 = vadd.f32 %v425, %v134
    %v431 = vsel %vm208, %v427, 0.0
    %432 = vadd.xlane.f32.xlu0 %v431
    %v433 = vpop.xlane.xlu0 %432
    %v434 = vsel %vm208, %v428, 0.0
    %435 = vadd.xlane.f32.xlu0 %v434
    %v436 = vpop.xlane.xlu0 %435
    %v437 = vsel %vm208, %v429, 0.0
    %438 = vadd.xlane.f32.xlu0 %v437
    %v439 = vpop.xlane.xlu0 %438
    %v440 = vsel %vm208, %v430, 0.0
    %441 = vadd.xlane.f32.xlu0 %v440
    %v442 = vpop.xlane.xlu0 %441
    %v443 = vrcp.pop 32.0
    %v444 = vmul.f32 32.0, %v443
    %v445 = vsub.f32 1.0, %v444
    %v446 = vmul.f32 %v443, %v445
    %v447 = vadd.f32 %v443, %v446
    %vm448 = vweird.f32 %v443
    %v449 = vsel %vm448, %v443, %v447
    %v450 = vmul.f32 %v433, %v449
    %v451 = vmul.f32 %v436, %v449
    %v452 = vmul.f32 %v439, %v449
    %v453 = vmul.f32 %v442, %v449
    %v454 = vsub.f32 %v427, %v450
    %v455 = vsub.f32 %v428, %v451
    %v456 = vsub.f32 %v429, %v452
    %v457 = vsub.f32 %v430, %v453
    %v458 = vmul.f32 %v454, %v454
    %v459 = vmul.f32 %v455, %v455
    %v460 = vmul.f32 %v456, %v456
    %v461 = vmul.f32 %v457, %v457
    %v462 = vsel %vm208, %v458, 0.0
    %463 = vadd.xlane.f32.xlu0 %v462
    %v464 = vpop.xlane.xlu0 %463
    %v465 = vsel %vm208, %v459, 0.0
    %466 = vadd.xlane.f32.xlu0 %v465
    %v467 = vpop.xlane.xlu0 %466
    %v468 = vsel %vm208, %v460, 0.0
    %469 = vadd.xlane.f32.xlu0 %v468
    %v470 = vpop.xlane.xlu0 %469
    %v471 = vsel %vm208, %v461, 0.0
    %472 = vadd.xlane.f32.xlu0 %v471
    %v473 = vpop.xlane.xlu0 %472
    %v474 = vmul.f32 %v464, %v449
    %v475 = vmul.f32 %v467, %v449
    %v476 = vmul.f32 %v470, %v449
    %v477 = vmul.f32 %v473, %v449
    %v478 = vadd.f32 %v474, 1e-05
    %v479 = vadd.f32 %v475, 1e-05
    %v480 = vadd.f32 %v476, 1e-05
    %v481 = vadd.f32 %v477, 1e-05
    %v482 = vrsqrt.pop %v478
    %v483 = vmul.f32 %v482, %v478
    %v484 = vmul.f32 %v483, %v482
    %v485 = vmul.f32 0.5, %v484
    %v486 = vsub.f32 1.5, %v485
    %v487 = vmul.f32 %v482, %v486
    %vm488 = vweird.f32 %v478
    %vm489 = vweird.f32 %v482
    %vm490 = vmor %vm488, %vm489
    %v491 = vsel %vm490, %v482, %v487
    %v492 = vrsqrt.pop %v479
    %v493 = vmul.f32 %v492, %v479
    %v494 = vmul.f32 %v493, %v492
    %v495 = vmul.f32 0.5, %v494
    %v496 = vsub.f32 1.5, %v495
    %v497 = vmul.f32 %v492, %v496
    %vm498 = vweird.f32 %v479
    %vm499 = vweird.f32 %v492
    %vm500 = vmor %vm498, %vm499
    %v501 = vsel %vm500, %v492, %v497
    %v502 = vrsqrt.pop %v480
    %v503 = vmul.f32 %v502, %v480
    %v504 = vmul.f32 %v503, %v502
    %v505 = vmul.f32 0.5, %v504
    %v506 = vsub.f32 1.5, %v505
    %v507 = vmul.f32 %v502, %v506
    %vm508 = vweird.f32 %v480
    %vm509 = vweird.f32 %v502
    %vm510 = vmor %vm508, %vm509
    %v511 = vsel %vm510, %v502, %v507
    %v512 = vrsqrt.pop %v481
    %v513 = vmul.f32 %v512, %v481
    %v514 = vmul.f32 %v513, %v512
    %v515 = vmul.f32 0.5, %v514
    %v516 = vsub.f32 1.5, %v515
    %v517 = vmul.f32 %v512, %v516
    %vm518 = vweird.f32 %v481
    %vm519 = vweird.f32 %v512
    %vm520 = vmor %vm518, %vm519
    %v521 = vsel %vm520, %v512, %v517
    %v522 = vmul.f32 %v454, %v491
    %v523 = vmul.f32 %v455, %v501
    %v524 = vmul.f32 %v456, %v511
    %v525 = vmul.f32 %v457, %v521
    %v526 = vld [vmem:[%s5] sm:$0x1]
    %v528 = vperm.slane %v526, 0
    %v530 = vmul.f32 %v522, %v528
    %v531 = vmul.f32 %v523, %v528
    %v532 = vmul.f32 %v524, %v528
    %v533 = vmul.f32 %v525, %v528
    %v534 = vld [vmem:[%s6] sm:$0x1]
    %v536 = vperm.slane %v534, 0
    %v538 = vadd.f32 %v530, %v536
    %v539 = vadd.f32 %v531, %v536
    %v540 = vadd.f32 %v532, %v536
    %v541 = vadd.f32 %v533, %v536
    %542 = vst.msk [vmem:[#allocation5] sm:$0xff] %vm208, %v538
    %543 = vst.msk [vmem:[#allocation5 + $0x8] sm:$0xff] %vm208, %v539
    %544 = vst.msk [vmem:[#allocation5 + $0x10] sm:$0xff] %vm208, %v540
    %545 = vst.msk [vmem:[#allocation5 + $0x18] sm:$0xff] %vm208, %v541
    // Predicated region
    $region34: #{positionwise_feed_forward.1} parent=1 // pred_check
      _
    $region35: #{positionwise_feed_forward.1} parent=1 // pred_check_branch
      %547 = sbr.rel (0) target = $region37
    $region36: #{positionwise_feed_forward.1} parent=1 // pred_region
      %549 = vsyncadd [#allocation4], 0
      %s550 = sshll.u32 [#allocation5], 4
      %s551 = int_to_ptr.vmem [resolvable:$true] %s550
      %s552 = sshll.u32 %s7, 4
      %s553 = int_to_ptr.hbm [resolvable:$true] %s552
      %558 = dma.vmem_to_hbm [thread:$0]  %s551, 512, %s553, [#allocation4], 128, 128, 8
    $region37: #{positionwise_feed_forward.1} parent=1 // pred_fallthru
      _
    // Predicated region
    $region38: #{positionwise_feed_forward.1} parent=1 // pred_check
      _
    $region39: #{positionwise_feed_forward.1} parent=1 // pred_check_branch
      %560 = sbr.rel (0) target = $region41
    $region40: #{positionwise_feed_forward.1} parent=1 // pred_region
      %562 = dma.done [#allocation4], 512
    $region41: #{positionwise_feed_forward.1} parent=1 // pred_fallthru
      _
    %563 = vsyncpa [#allocation3], 1
    %564 = vsyncpa [#allocation4], 1

</llo_original>
